<compile_context>
chip_gen: v5e
topology: v5e:2x2
jax: 0.10.0
libtpu: 0.0.40
codegen_flags: <defaults>
</compile_context>

<pallas_src>
import functools
import numpy as np

import jax
import jax.numpy as jnp
from jax import lax
from jax.experimental import pallas as pl
from jax.experimental.pallas import tpu as pltpu


# ----------------------------------------------------------------------------
# Hardware-aware tiling helpers.
# ----------------------------------------------------------------------------

def _vmem_capacity_bytes():
    try:
        return int(pltpu.get_tpu_info().vmem_capacity_bytes)
    except Exception:
        return 64 * 1024 * 1024  # conservative fallback (v7x per-core VMEM)


def _vmem_limit_bytes(vmem_cap):
    # <= ~51 MiB on 64 MiB parts (v7x), ~100 MiB on 128 MiB parts (v5e/v6e).
    return int(min(vmem_cap * 0.8, 100 * 1024 * 1024))


def _pick_tile(n, target):
    """Largest multiple-of-8 divisor of n that is <= target, else n itself."""
    if n <= target:
        return n
    t = (target // 8) * 8
    while t >= 8:
        if n % t == 0:
            return t
        t -= 8
    return n  # TODO(synk): pad ragged lengths to a tile multiple instead.


def _pick_q_tile(len_q, batch, vmem_cap):
    target = 512 if vmem_cap >= 96 * 1024 * 1024 else 256
    qt = _pick_tile(len_q, target)
    # v7x has 2 TensorCores: with batch == 1 make sure the "parallel" grid axes
    # expose at least 2 programs.
    if batch == 1 and qt == len_q and len_q >= 16:
        half = _pick_tile(len_q, max(8, len_q // 2))
        if half < len_q:
            qt = half
    return qt


# ----------------------------------------------------------------------------
# Stage 1: fused linear projection  y = x @ W + b  (full output width per step).
# ----------------------------------------------------------------------------

def _linear_kernel(x_ref, w_ref, b_ref, o_ref):
    # bf16 operands to the MXU, f32 accumulation, f32 bias add.
    x = x_ref[...].astype(w_ref.dtype)
    y = jnp.dot(x, w_ref[...], preferred_element_type=jnp.float32)
    o_ref[...] = (y + b_ref[...]).astype(o_ref.dtype)


def _linear(x, w, b, out_dtype, vmem_limit):
    batch, length, d_in = x.shape
    d_out = w.shape[1]
    tm = _pick_tile(length, 512)
    return pl.pallas_call(
        _linear_kernel,
        out_shape=jax.ShapeDtypeStruct((batch, length, d_out), out_dtype),
        grid_spec=pltpu.PrefetchScalarGridSpec(
            num_scalar_prefetch=0,
            grid=(batch, length // tm),
            in_specs=[
                pl.BlockSpec((None, tm, d_in), lambda bb, t: (bb, t, 0)),
                pl.BlockSpec((d_in, d_out), lambda bb, t: (0, 0)),
                pl.BlockSpec((1, d_out), lambda bb, t: (0, 0)),
            ],
            out_specs=pl.BlockSpec((None, tm, d_out), lambda bb, t: (bb, t, 0)),
        ),
        compiler_params=pltpu.CompilerParams(
            dimension_semantics=("parallel", "parallel"),
            vmem_limit_bytes=vmem_limit,
        ),
    )(x, w, b)


# ----------------------------------------------------------------------------
# Stage 2: per-head attention + output projection + residual + LayerNorm.
# ----------------------------------------------------------------------------

def _mha_attention_kernel(eps, write_attn,
                          qh_ref, kh_ref, vh_ref, wo_ref, bo_ref,
                          gamma_ref, beta_ref, qres_ref, *outs):
    """One grid step = (batch b, q-tile t, head h).

    qh_ref   : (q_tile, d_k)    scaled Q for this head (scale folded into W_Q)
    kh_ref   : (len_k, d_k)     this head's keys      (compute_dtype, bf16)
    vh_ref   : (len_k, d_v)     this head's values
    wo_ref   : (d_v, d_model)   this head's W_O rows
    qres_ref : (q_tile, d_model) original q, for residual + LayerNorm
    outs     : (out_ref[, attn_ref], acc_ref)
    """
    if write_attn:
        out_ref, attn_ref, acc_ref = outs
    else:
        out_ref, acc_ref = outs
        attn_ref = None

    h = pl.program_id(2)

    @pl.when(h == 0)
    def _init():
        acc_ref[...] = jnp.zeros_like(acc_ref)

    q_h = qh_ref[...]                       # already scaled by 1/sqrt(d_k)
    k_h = kh_ref[...]
    v_h = vh_ref[...]

    # QK^T contracting the last dims of both operands (no K transpose relayout);
    # bf16 operands, f32 accumulation on the MXU.
    s = lax.dot_general(q_h, k_h,
                        dimension_numbers=(((1,), (1,)), ((), ())),
                        preferred_element_type=jnp.float32)

    # Exact softmax in f32 (v5e has no bf16 VPU/EUP); one EUP reciprocal per row.
    s = s - jnp.max(s, axis=-1, keepdims=True)
    e = jnp.exp(s)
    denom = jnp.sum(e, axis=-1, keepdims=True)
    p = e * pl.reciprocal(denom, approx=True)

    if write_attn:
        attn_ref[...] = p.astype(attn_ref.dtype)

    # ctx_h = P @ V_h ; output projection decomposes over heads:
    #   o = sum_h ctx_h @ W_O[h]   -> accumulate in f32 VMEM scratch, no concat.
    ctx = jnp.dot(p.astype(v_h.dtype), v_h, preferred_element_type=jnp.float32)
    acc_ref[...] += jnp.dot(ctx.astype(wo_ref.dtype), wo_ref[...],
                            preferred_element_type=jnp.float32)

    @pl.when(h == pl.num_programs(2) - 1)
    def _finalize():
        # bias + residual + LayerNorm (biased variance, eps=1e-5), all f32.
        x = acc_ref[...] + bo_ref[...] + qres_ref[...].astype(jnp.float32)
        mean = jnp.mean(x, axis=-1, keepdims=True)
        var = jnp.mean((x - mean) ** 2, axis=-1, keepdims=True)
        y = (x - mean) * lax.rsqrt(var + eps)
        out_ref[...] = (y * gamma_ref[...] + beta_ref[...]).astype(out_ref.dtype)


def multi_head_attention_sequence(q, k, v, params, *, n_head, d_k, d_v,
                                  q_tile=None, attn_dtype=None,
                                  return_attn=True,
                                  compute_dtype=jnp.bfloat16):
    batch, len_q, d_model = q.shape
    _, len_k, _ = k.shape

    if attn_dtype is None:
        attn_dtype = q.dtype  # pass jnp.bfloat16 to halve the O(L^2) writeback

    vmem_cap = _vmem_capacity_bytes()
    vmem_limit = _vmem_limit_bytes(vmem_cap)

    if q_tile is None:
        q_tile = _pick_q_tile(len_q, batch, vmem_cap)
    if len_q % q_tile != 0:
        q_tile = len_q  # TODO(synk): pad len_q to a tile multiple for ragged lengths
    n_qt = len_q // q_tile

    # Host-side weight prep: fold 1/sqrt(d_k) into W_Q/b_Q, cast weights to the
    # MXU operand dtype, keep biases / LayerNorm params in f32.
    scale = 1.0 / float(np.sqrt(d_k))
    cd = compute_dtype
    wq = (params["W_Q"] * scale).astype(cd)
    bq = (params["b_Q"] * scale).astype(jnp.float32)
    wk = params["W_K"].astype(cd)
    bk = params["b_K"].astype(jnp.float32)
    wv = params["W_V"].astype(cd)
    bv = params["b_V"].astype(jnp.float32)
    wo = params["W_O"].reshape(n_head, d_v, d_model).astype(cd)   # (H, dv, dm)
    bo = params["b_O"].astype(jnp.float32)
    gamma = params["gamma"].astype(jnp.float32)
    beta = params["beta"].astype(jnp.float32)

    # Stage 1: full-width projections, computed once.
    qp = _linear(q, wq, bq, cd, vmem_limit)            # (B, Lq, H*dk), pre-scaled
    kp = _linear(k, wk, bk, cd, vmem_limit)            # (B, Lk, H*dk)
    vp = _linear(v, wv, bv, cd, vmem_limit)            # (B, Lk, H*dv)

    # Head-major layout so the attention kernel DMAs one head's (len_k, d_k)
    # slice per step.  This transpose is O(B*L*H*d) bytes, tiny vs attention
    # traffic, and XLA handles it well.
    qh = qp.reshape(batch, len_q, n_head, d_k).transpose(0, 2, 1, 3)
    kh = kp.reshape(batch, len_k, n_head, d_k).transpose(0, 2, 1, 3)
    vh = vp.reshape(batch, len_k, n_head, d_v).transpose(0, 2, 1, 3)

    kernel = functools.partial(_mha_attention_kernel, 1e-5, return_attn)

    in_specs = [
        pl.BlockSpec((None, None, q_tile, d_k), lambda b, t, h: (b, h, t, 0)),   # Q_h
        pl.BlockSpec((None, None, len_k, d_k), lambda b, t, h: (b, h, 0, 0)),    # K_h
        pl.BlockSpec((None, None, len_k, d_v), lambda b, t, h: (b, h, 0, 0)),    # V_h
        pl.BlockSpec((None, d_v, d_model), lambda b, t, h: (h, 0, 0)),           # W_O[h]
        pl.BlockSpec((1, d_model), lambda b, t, h: (0, 0)),                      # b_O
        pl.BlockSpec((1, d_model), lambda b, t, h: (0, 0)),                      # gamma
        pl.BlockSpec((1, d_model), lambda b, t, h: (0, 0)),                      # beta
        pl.BlockSpec((None, q_tile, d_model), lambda b, t, h: (b, t, 0)),        # residual q
    ]
    out_spec = pl.BlockSpec((None, q_tile, d_model), lambda b, t, h: (b, t, 0))
    attn_spec = pl.BlockSpec((None, None, q_tile, len_k), lambda b, t, h: (b, h, t, 0))

    if return_attn:
        out_shape = (
            jax.ShapeDtypeStruct((batch, len_q, d_model), q.dtype),
            jax.ShapeDtypeStruct((batch, n_head, len_q, len_k), attn_dtype),
        )
        out_specs = [out_spec, attn_spec]
    else:
        out_shape = jax.ShapeDtypeStruct((batch, len_q, d_model), q.dtype)
        out_specs = out_spec

    res = pl.pallas_call(
        kernel,
        out_shape=out_shape,
        grid_spec=pltpu.PrefetchScalarGridSpec(
            num_scalar_prefetch=0,
            grid=(batch, n_qt, n_head),
            in_specs=in_specs,
            out_specs=out_specs,
            scratch_shapes=[pltpu.VMEM((q_tile, d_model), jnp.float32)],
        ),
        compiler_params=pltpu.CompilerParams(
            dimension_semantics=("parallel", "parallel", "arbitrary"),
            vmem_limit_bytes=vmem_limit,
        ),
    )(qh, kh, vh, wo, bo, gamma, beta, q)

    if return_attn:
        out, attn = res
        return out, attn
    return res, None


# ----------------------------------------------------------------------------
# Parameter init + pure-JAX reference (mirrors the PyTorch forward, dropout=id).
# ----------------------------------------------------------------------------

def init_params(key, d_model, n_head, d_k, d_v):
    ks = jax.random.split(key, 8)
    s = 0.1
    return {
        "W_Q": s * jax.random.normal(ks[0], (d_model, n_head * d_k), jnp.float32),
        "b_Q": s * jax.random.normal(ks[1], (1, n_head * d_k), jnp.float32),
        "W_K": s * jax.random.normal(ks[2], (d_model, n_head * d_k), jnp.float32),
        "b_K": s * jax.random.normal(ks[3], (1, n_head * d_k), jnp.float32),
        "W_V": s * jax.random.normal(ks[4], (d_model, n_head * d_v), jnp.float32),
        "b_V": s * jax.random.normal(ks[5], (1, n_head * d_v), jnp.float32),
        "W_O": s * jax.random.normal(ks[6], (n_head * d_v, d_model), jnp.float32),
        "b_O": s * jax.random.normal(ks[7], (1, d_model), jnp.float32),
        "gamma": jnp.ones((1, d_model), jnp.float32),
        "beta": jnp.zeros((1, d_model), jnp.float32),
    }


def reference_forward(q, k, v, params, *, n_head, d_k, d_v):
    batch, len_q, d_model = q.shape
    Q = (q @ params["W_Q"] + params["b_Q"][0]).reshape(batch, len_q, n_head, d_k)
    K = (k @ params["W_K"] + params["b_K"][0]).reshape(batch, -1, n_head, d_k)
    V = (v @ params["W_V"] + params["b_V"][0]).reshape(batch, -1, n_head, d_v)
    Q = Q.transpose(0, 2, 1, 3)
    K = K.transpose(0, 2, 3, 1)
    V = V.transpose(0, 2, 1, 3)
    attn = jax.nn.softmax(jnp.matmul(Q, K) / np.sqrt(d_k), axis=-1)
    out = jnp.matmul(attn, V).transpose(0, 2, 1, 3).reshape(batch, len_q, n_head * d_v)
    out = out @ params["W_O"] + params["b_O"][0]
    x = out + q
    mean = jnp.mean(x, axis=-1, keepdims=True)
    var = jnp.mean((x - mean) ** 2, axis=-1, keepdims=True)
    y = (x - mean) * lax.rsqrt(var + 1e-5)
    return y * params["gamma"][0] + params["beta"][0], attn


if __name__ == "__main__":
    batch, seq, d_model = 2, 8, 32
    n_head, d_k, d_v = 4, 8, 8

    key = jax.random.PRNGKey(0)
    kq, kk, kv, kp = jax.random.split(key, 4)
    q = jax.random.normal(kq, (batch, seq, d_model), jnp.float32)
    k = jax.random.normal(kk, (batch, seq, d_model), jnp.float32)
    v = jax.random.normal(kv, (batch, seq, d_model), jnp.float32)
    params = init_params(kp, d_model, n_head, d_k, d_v)

    out, attn = multi_head_attention_sequence(
        q, k, v, params, n_head=n_head, d_k=d_k, d_v=d_v)
    jax.block_until_ready((out, attn))

    out_expected, attn_expected = reference_forward(
        q, k, v, params, n_head=n_head, d_k=d_k, d_v=d_v)
    # bf16 MXU operands => loosened tolerance (expected precision trade-off).
    np.testing.assert_allclose(np.asarray(out, dtype=np.float32),
                               np.asarray(out_expected), rtol=2e-2, atol=2e-2)
    np.testing.assert_allclose(np.asarray(attn, dtype=np.float32),
                               np.asarray(attn_expected), rtol=2e-2, atol=2e-2)

    print("KERNEL_OK")
</pallas_src>

<mosaic_0001>
module attributes {stable_mosaic.version = 11 : i64} {
  func.func @_linear_kernel(%arg0: i32, %arg1: i32, %arg2: memref<1x8x32xf32, #tpu.memory_space<vmem>>, %arg3: memref<32x32xbf16, #tpu.memory_space<vmem>>, %arg4: memref<1x32xf32, #tpu.memory_space<vmem>>, %arg5: memref<1x8x32xbf16, #tpu.memory_space<vmem>>) attributes {dimension_semantics = [#tpu.dimension_semantics<parallel>, #tpu.dimension_semantics<parallel>], iteration_bounds = array<i64: 2, 1>, scalar_prefetch = 0 : i64, scratch_operands = 0 : i64, tpu.core_type = #tpu.core_type<tc>, window_params = [{transform_indices = @transform_0, window_bounds = array<i64: 1, 8, 32>}, {pipeline_mode = #tpu.pipeline_mode<synchronous>, transform_indices = @transform_1, window_bounds = array<i64: 32, 32>}, {pipeline_mode = #tpu.pipeline_mode<synchronous>, transform_indices = @transform_2, window_bounds = array<i64: 1, 32>}, {transform_indices = @transform_3, window_bounds = array<i64: 1, 8, 32>}]} {
    %c0 = arith.constant 0 : index
    %c0_0 = arith.constant 0 : index
    %c0_1 = arith.constant 0 : index
    %0 = vector.load %arg2[%c0, %c0_0, %c0_1] : memref<1x8x32xf32, #tpu.memory_space<vmem>>, vector<1x8x32xf32>
    %1 = vector.shape_cast %0 : vector<1x8x32xf32> to vector<8x32xf32>
    %2 = arith.truncf %1 : vector<8x32xf32> to vector<8x32xbf16>
    %c0_2 = arith.constant 0 : index
    %c0_3 = arith.constant 0 : index
    %3 = vector.load %arg3[%c0_2, %c0_3] : memref<32x32xbf16, #tpu.memory_space<vmem>>, vector<32x32xbf16>
    %cst = arith.constant dense<0.000000e+00> : vector<8x32xf32>
    %4 = tpu.matmul %2, %3, %cst {dimension_numbers = #tpu.dot_dimension_numbers<[1], [0], [0], [1], [0, 0, 1, 1], [], []>} : vector<8x32xbf16>, vector<32x32xbf16>, vector<8x32xf32> -> vector<8x32xf32>
    %c0_4 = arith.constant 0 : index
    %c0_5 = arith.constant 0 : index
    %5 = vector.load %arg4[%c0_4, %c0_5] : memref<1x32xf32, #tpu.memory_space<vmem>>, vector<1x32xf32>
    %6 = vector.broadcast %5 : vector<1x32xf32> to vector<8x32xf32>
    %7 = arith.addf %4, %6 : vector<8x32xf32>
    %8 = arith.truncf %7 : vector<8x32xf32> to vector<8x32xbf16>
    %c0_6 = arith.constant 0 : index
    %c0_7 = arith.constant 0 : index
    %c0_8 = arith.constant 0 : index
    %9 = vector.load %arg5[%c0_6, %c0_7, %c0_8] : memref<1x8x32xbf16, #tpu.memory_space<vmem>>, vector<1x8x32xbf16>
    %10 = vector.shape_cast %9 : vector<1x8x32xbf16> to vector<8x32xbf16>
    %11 = vector.shape_cast %8 : vector<8x32xbf16> to vector<1x8x32xbf16>
    tpu.vector_store %arg5[%c0_6, %c0_7, %c0_8], %11 {strides = array<i32>} : memref<1x8x32xbf16, #tpu.memory_space<vmem>>, vector<1x8x32xbf16>,
    return
  }
  func.func @transform_0(%arg0: i32, %arg1: i32) -> (i32, i32, i32) {
    %c0_i32 = arith.constant 0 : i32
    %c0_i32_0 = arith.constant 0 : i32
    return %arg0, %arg1, %c0_i32 : i32, i32, i32
  }
  func.func @transform_1(%arg0: i32, %arg1: i32) -> (i32, i32) {
    %c0_i32 = arith.constant 0 : i32
    %c0_i32_0 = arith.constant 0 : i32
    %c0_i32_1 = arith.constant 0 : i32
    return %c0_i32, %c0_i32_0 : i32, i32
  }
  func.func @transform_2(%arg0: i32, %arg1: i32) -> (i32, i32) {
    %c0_i32 = arith.constant 0 : i32
    %c0_i32_0 = arith.constant 0 : i32
    %c0_i32_1 = arith.constant 0 : i32
    return %c0_i32, %c0_i32_0 : i32, i32
  }
  func.func @transform_3(%arg0: i32, %arg1: i32) -> (i32, i32, i32) {
    %c0_i32 = arith.constant 0 : i32
    %c0_i32_0 = arith.constant 0 : i32
    return %arg0, %arg1, %c0_i32 : i32, i32, i32
  }
}

</mosaic_0001>

<llo_original>
// kernel: tpu_custom_call.1
$region0: #{tpu_custom_call.1}
  #allocation0 [shape = 'u32[]', space=smem, size = 0x4, offset = 0x4, fixed_abs, tag = 'smem constant byte address 0x4 - core index']
  #allocation1 [shape = 'u32[72,128]{1,0:T(1,128)}', space=vmem, size = 0x9000, scoped, tag = 'internal scratch']
  %s0 = inlined_call_operand.hbm [shape: f32[2,8,32], index: 0, kind: input, shape index: {}]
  %s1 = inlined_call_operand.hbm [shape: bf16[32,32], index: 1, kind: input, shape index: {}]
  %s2 = inlined_call_operand.vmem [shape: f32[1,32], index: 2, kind: input, shape index: {}]
  %s3 = inlined_call_operand.hbm [shape: bf16[2,8,32], index: 3, kind: output, shape index: {}]
  %s4 = sld [smem:[#allocation0]]
  $region53: #{tpu_custom_call.1} parent=0
    _
  %s6 = ssub.s32 1, %s4
  %s7 = scalar_select 0, %s6, %s4
  $region1: #{tpu_custom_call.1} parent=0
    #allocation2 [shape = 'u8[8192]{0}', space=vmem, size = 0x2000, scoped, tag = 'input window, operand 0']
    #allocation3 [shape = 's32[2]{0}', space=sflag, size = 0x8, scoped, tag = 'scoped memory for tpu_custom_call.1']
    #allocation4 [shape = 's32[2]{0}', space=sflag, size = 0x8, scoped, tag = 'scoped memory for tpu_custom_call.1']
    #allocation5 [shape = 'u8[8192]{0}', space=vmem, size = 0x2000, scoped, tag = 'input window, operand 1, single buffered']
    #allocation6 [shape = 's32[1]{0}', space=sflag, size = 0x4, scoped, tag = 'scoped memory for tpu_custom_call.1']
    #allocation7 [shape = 'u8[4096]{0}', space=vmem, size = 0x1000, scoped, tag = 'output window, operand 0']
    %8 = vsyncpa [#allocation3], 0
    %s9 = scalar_lea.sflag [#allocation3], 1
    %10 = vsyncpa %s9, 0
    %11 = vsyncpa [#allocation6], 0
    %12 = vsyncpa [#allocation4], 0
    %s13 = scalar_lea.sflag [#allocation4], 1
    %14 = vsyncpa %s13, 0
    loop: start=0, step=1, limit=4
    $region2: #{tpu_custom_call.1} parent=1 // loop_pre_header
      _
    $region3: #{tpu_custom_call.1} parent=1 // loop_header
      %s16 = sphi 0, %s20
      %p17 = scmp.ge.s32.totalorder %s16, 4
      %s23 = sphi 0, %s35
      %s24 = sphi 0, %s31
      %s25 = sphi 0, %s23
      %s26 = sphi 0, %s24
      %s27 = sphi 0, %s25
      %s28 = sphi 0, %s26
      %s40 = sphi 0, %s42
      %s43 = sphi 0, %s40
      %s44 = sphi 0, %s43
      %s60 = sphi 0, %s44
      %s64 = sphi 0, %s64
      %s66 = sphi 0, %s64
      %s67 = sphi 0, %s66
      %s81 = sphi 0, %s67
      %s85 = sphi 0, %s85
      %s87 = sphi 0, %s85
      %s88 = sphi 0, %s87
      %s102 = sphi 0, %s88
      %s110 = sphi 0, %s112
      %s113 = sphi 0, %s110
      %s114 = sphi 0, %s113
      %s130 = sphi 0, %s114
    $region4: #{tpu_custom_call.1} parent=1 // loop_header_branch
      %19 = sbr.rel (%p17) target = $region8
    $region5: #{tpu_custom_call.1} parent=1 // loop_body
      %s21 = ssub.s32 %s16, 1
      %s22 = ssub.s32 %s16, 2
      %s29 = sadd.s32 1, %s24
      %p30 = scmp.ge.s32.totalorder %s29, 1
      %s31 = scalar_select %p30, 0, %s29
      %s32 = sadd.s32 1, %s23
      %s33 = scalar_select %p30, %s32, %s23
      %p34 = scmp.ge.s32.totalorder %s33, 2
      %s35 = scalar_select %p34, 0, %s33
      %s36 = ssub.s32 %s23, %s35
      %s37 = ssub.s32 %s24, %s31
      %s38 = sor.u32 %s36, %s37
      %p39 = scmp.eq.s32.totalorder %s38, 0
      %s41 = sadd.s32 %s40, 1
      %s42 = scalar_select %p39, %s40, %s41
      %p45 = pneg %p39
      %p46 = scmp.eq.s32.totalorder %s16, 1
      %p47 = por %p45, %p46
      %p48 = scmp.ne.s32.totalorder %s40, %s43
      %p49 = scmp.eq.s32.totalorder %s16, 0
      %p50 = por %p48, %p49
      %p51 = scmp.ne.s32.totalorder %s40, %s43
      %p52 = scmp.eq.s32.totalorder %s21, 1
      %p53 = por %p51, %p52
      %p54 = scmp.ne.s32.totalorder %s43, %s44
      %p55 = scmp.eq.s32.totalorder %s21, 0
      %p56 = por %p54, %p55
      %p57 = scmp.ne.s32.totalorder %s43, %s44
      %p58 = scmp.eq.s32.totalorder %s22, 1
      %p59 = por %p57, %p58
      %p61 = scmp.ne.s32.totalorder %s44, %s60
      %p62 = scmp.eq.s32.totalorder %s22, 0
      %p63 = por %p61, %p62
      %s65 = sadd.s32 %s64, 1
      %p68 = scmp.eq.s32.totalorder %s16, 1
      %p69 = scmp.ne.s32.totalorder %s64, %s66
      %p70 = scmp.eq.s32.totalorder %s16, 0
      %p71 = por %p69, %p70
      %p72 = scmp.ne.s32.totalorder %s64, %s66
      %p73 = scmp.eq.s32.totalorder %s21, 1
      %p74 = por %p72, %p73
      %p75 = scmp.ne.s32.totalorder %s66, %s67
      %p76 = scmp.eq.s32.totalorder %s21, 0
      %p77 = por %p75, %p76
      %p78 = scmp.ne.s32.totalorder %s66, %s67
      %p79 = scmp.eq.s32.totalorder %s22, 1
      %p80 = por %p78, %p79
      %p82 = scmp.ne.s32.totalorder %s67, %s81
      %p83 = scmp.eq.s32.totalorder %s22, 0
      %p84 = por %p82, %p83
      %s86 = sadd.s32 %s85, 1
      %p89 = scmp.eq.s32.totalorder %s16, 1
      %p90 = scmp.ne.s32.totalorder %s85, %s87
      %p91 = scmp.eq.s32.totalorder %s16, 0
      %p92 = por %p90, %p91
      %p93 = scmp.ne.s32.totalorder %s85, %s87
      %p94 = scmp.eq.s32.totalorder %s21, 1
      %p95 = por %p93, %p94
      %p96 = scmp.ne.s32.totalorder %s87, %s88
      %p97 = scmp.eq.s32.totalorder %s21, 0
      %p98 = por %p96, %p97
      %p99 = scmp.ne.s32.totalorder %s87, %s88
      %p100 = scmp.eq.s32.totalorder %s22, 1
      %p101 = por %p99, %p100
      %p103 = scmp.ne.s32.totalorder %s88, %s102
      %p104 = scmp.eq.s32.totalorder %s22, 0
      %p105 = por %p103, %p104
      %s106 = ssub.s32 %s23, %s35
      %s107 = ssub.s32 %s24, %s31
      %s108 = sor.u32 %s106, %s107
      %p109 = scmp.eq.s32.totalorder %s108, 0
      %s111 = sadd.s32 %s110, 1
      %s112 = scalar_select %p109, %s110, %s111
      %p115 = pneg %p109
      %p116 = scmp.eq.s32.totalorder %s16, 1
      %p117 = por %p115, %p116
      %p118 = scmp.ne.s32.totalorder %s110, %s113
      %p119 = scmp.eq.s32.totalorder %s16, 0
      %p120 = por %p118, %p119
      %p121 = scmp.ne.s32.totalorder %s110, %s113
      %p122 = scmp.eq.s32.totalorder %s21, 1
      %p123 = por %p121, %p122
      %p124 = scmp.ne.s32.totalorder %s113, %s114
      %p125 = scmp.eq.s32.totalorder %s21, 0
      %p126 = por %p124, %p125
      %p127 = scmp.ne.s32.totalorder %s113, %s114
      %p128 = scmp.eq.s32.totalorder %s22, 1
      %p129 = por %p127, %p128
      %p131 = scmp.ne.s32.totalorder %s114, %s130
      %p132 = scmp.eq.s32.totalorder %s22, 0
      %p133 = por %p131, %p132
      %p134 = scmp.le.s32.totalorder 1, %s16
      %p135 = scmp.lt.s32.totalorder %s16, 3
      %p136 = pnand %p134, %p135
      %p137 = pneg %p136
      // Predicated region
      $region9: #{tpu_custom_call.1} parent=5 // pred_check
        _
      $region10: #{tpu_custom_call.1} parent=5 // pred_check_branch
        %139 = sbr.rel (%p136) target = $region12
      $region11: #{tpu_custom_call.1} parent=5 // pred_region
        %s140 = ssub.s32 %s16, 1
        // Predicated region
        $region13: #{tpu_custom_call.1} parent=11 // pred_check
          %p141 = pneg %p77
        $region14: #{tpu_custom_call.1} parent=11 // pred_check_branch
          %143 = sbr.rel (%p141) target = $region16
        $region15: #{tpu_custom_call.1} parent=11 // pred_region
          %145 = vsyncadd [#allocation6], 0
          %s146 = sshll.u32 %s1, 4
          %s147 = int_to_ptr.hbm [resolvable:$true] %s146
          %s148 = sshll.u32 [#allocation5], 4
          %s149 = int_to_ptr.vmem [resolvable:$true] %s148
          %154 = dma.hbm_to_vmem [thread:$0]  %s147, 256, %s149, [#allocation6], 64, 64, 4
        $region16: #{tpu_custom_call.1} parent=11 // pred_fallthru
          _
        // Predicated region
        $region17: #{tpu_custom_call.1} parent=11 // pred_check
          %p155 = pneg %p98
        $region18: #{tpu_custom_call.1} parent=11 // pred_check_branch
          %157 = sbr.rel (%p155) target = $region20
        $region19: #{tpu_custom_call.1} parent=11 // pred_region
          _
        $region20: #{tpu_custom_call.1} parent=11 // pred_fallthru
          _
      $region12: #{tpu_custom_call.1} parent=5 // pred_fallthru
        _
      %p158 = scmp.lt.s32.totalorder %s16, 2
      // Predicated region
      $region21: #{tpu_custom_call.1} parent=5 // pred_check
        %p159 = pneg %p158
      $region22: #{tpu_custom_call.1} parent=5 // pred_check_branch
        %161 = sbr.rel (%p159) target = $region24
      $region23: #{tpu_custom_call.1} parent=5 // pred_region
        // Predicated region
        $region25: #{tpu_custom_call.1} parent=23 // pred_check
          %p162 = pneg %p50
        $region26: #{tpu_custom_call.1} parent=23 // pred_check_branch
          %164 = sbr.rel (%p162) target = $region28
        $region27: #{tpu_custom_call.1} parent=23 // pred_region
          %s165 = sand.u32 %s40, 1
          %s166 = scalar_lea.sflag [#allocation3], %s165
          %s167 = sand.u32 %s40, 1
          %s168 = smul.addr %s167, 8
          %s169 = scalar_lea.vmem [#allocation2], %s168
          %171 = vsyncadd %s166, 0
          %s172 = sadd.s32 %s24, %s23
          %s173 = smul.addr %s172, 8
          %s174 = scalar_lea.hbm %s0, %s173
          %s176 = sshll.u32 %s174, 4
          %s177 = int_to_ptr.hbm [resolvable:$true] %s176
          %s178 = sshll.u32 %s169, 4
          %s179 = int_to_ptr.vmem [resolvable:$true] %s178
          %181 = dma.hbm_to_vmem [thread:$0]  %s177, 128, %s179, %s166
        $region28: #{tpu_custom_call.1} parent=23 // pred_fallthru
          _
      $region24: #{tpu_custom_call.1} parent=5 // pred_fallthru
        _
      %p182 = scmp.le.s32.totalorder 1, %s16
      %p183 = scmp.lt.s32.totalorder %s16, 3
      %p184 = pnand %p182, %p183
      %p185 = pneg %p184
      // Predicated region
      $region29: #{tpu_custom_call.1} parent=5 // pred_check
        _
      $region30: #{tpu_custom_call.1} parent=5 // pred_check_branch
        %187 = sbr.rel (%p184) target = $region32
      $region31: #{tpu_custom_call.1} parent=5 // pred_region
        %s188 = ssub.s32 %s16, 1
        %s189 = sand.u32 %s43, 1
        %s190 = scalar_lea.sflag [#allocation3], %s189
        %s191 = sand.u32 %s43, 1
        %s192 = smul.addr %s191, 8
        %s193 = scalar_lea.vmem [#allocation2], %s192
        // Predicated region
        $region33: #{tpu_custom_call.1} parent=31 // pred_check
          %p194 = pneg %p56
        $region34: #{tpu_custom_call.1} parent=31 // pred_check_branch
          %196 = sbr.rel (%p194) target = $region36
        $region35: #{tpu_custom_call.1} parent=31 // pred_region
          %198 = dma.done %s190, 128
        $region36: #{tpu_custom_call.1} parent=31 // pred_fallthru
          _
        // Predicated region
        $region37: #{tpu_custom_call.1} parent=31 // pred_check
          %p199 = pneg %p77
        $region38: #{tpu_custom_call.1} parent=31 // pred_check_branch
          %201 = sbr.rel (%p199) target = $region40
        $region39: #{tpu_custom_call.1} parent=31 // pred_region
          %203 = dma.done [#allocation6], 256
        $region40: #{tpu_custom_call.1} parent=31 // pred_fallthru
          _
        %s204 = sand.u32 %s43, 1
        %s205 = scalar_lea.sflag [#allocation3], %s204
        %s206 = sand.u32 %s43, 1
        %s207 = smul.addr %s206, 8
        %s208 = scalar_lea.vmem [#allocation2], %s207
        %p209 = pneg %p56
        %p210 = pneg %p53
        %p211 = pneg %p77
        %p212 = pneg %p74
        %p213 = pneg %p98
        %p214 = pneg %p95
        %p215 = pneg %p126
        %p216 = pneg %p123
        %s217 = sand.u32 %s113, 1
        %s218 = scalar_lea.sflag [#allocation4], %s217
        %s219 = sand.u32 %s113, 1
        %s220 = smul.addr %s219, 4
        %s221 = scalar_lea.vmem [#allocation7], %s220
        %v223 = vld [vmem:[%s193] sm:$0xff]
        %v224 = vpack.c.bf16 %v223, %v223
        %v225 = vld [vmem:[#allocation5] sm:$0xf]
        %v226 = vld [vmem:[#allocation5 + $0x4] sm:$0xf]
        %v227 = vld [vmem:[#allocation5 + $0x8] sm:$0xf]
        %v228 = vld [vmem:[#allocation5 + $0xc] sm:$0xf]
        %v229 = vld [vmem:[%s2] sm:$0x1]
        %v231 = vperm.slane %v229, 0
        %v237 = vunpack.c.l.b16 %v225
        %v238 = vunpack.c.l.b16 %v226
        %v239 = vunpack.c.l.b16 %v227
        %v240 = vunpack.c.l.b16 %v228
        %v241 = vpack.c.b16 %v238, %v237
        %v242 = vpack.c.b16 %v240, %v239
        %vm245 = vcmask 261120
        %v247 = vsel %vm245, %v224, 0
        %249 = vmatpush.bf16.msra.mxu0 0
        %250 = vmatpush.bf16.msra.mxu0 0
        %251 = vmatpush.bf16.msra.mxu0 0
        %252 = vmatpush.bf16.msra.mxu0 0
        %253 = vmatpush.bf16.msra.mxu0 0
        %254 = vmatpush.bf16.msra.mxu0 0
        %255 = vmatpush.bf16.msra.mxu0 %v242
        %256 = vmatpush.bf16.msra.mxu0 %v241
        %257 = vmatmul.bf16.gmra.mxu0 %v247
        %v258 = vpop.f32.mrf.mxu0
        %v259 = vadd.f32 %v231, %v258
        %v260 = vpop.f32.mrf.mxu0
        %261 = vdwg.mxu0
        %v262 = vpack.c.bf16 %v259, %v259
        %vm263 = vcmask 257024
        %264 = vst.msk [vmem:[%s221] sm:$0xf] %vm263, %v262
        %s265 = sand.u32 %s113, 1
        %s266 = scalar_lea.sflag [#allocation4], %s265
        %s267 = sand.u32 %s113, 1
        %s268 = smul.addr %s267, 4
        %s269 = scalar_lea.vmem [#allocation7], %s268
        // Predicated region
        $region41: #{tpu_custom_call.1} parent=31 // pred_check
          %p270 = pneg %p123
        $region42: #{tpu_custom_call.1} parent=31 // pred_check_branch
          %272 = sbr.rel (%p270) target = $region44
        $region43: #{tpu_custom_call.1} parent=31 // pred_region
          %274 = vsyncadd %s266, 0
          %s275 = sadd.s32 %s26, %s25
          %s276 = smul.addr %s275, 4
          %s277 = scalar_lea.hbm %s3, %s276
          %s279 = sshll.u32 %s269, 4
          %s280 = int_to_ptr.vmem [resolvable:$true] %s279
          %s281 = sshll.u32 %s277, 4
          %s282 = int_to_ptr.hbm [resolvable:$true] %s281
          %284 = dma.vmem_to_hbm [thread:$0]  %s280, 64, %s282, %s266
        $region44: #{tpu_custom_call.1} parent=31 // pred_fallthru
          _
      $region32: #{tpu_custom_call.1} parent=5 // pred_fallthru
        _
      %p285 = scmp.le.s32.totalorder 2, %s16
      // Predicated region
      $region45: #{tpu_custom_call.1} parent=5 // pred_check
        %p286 = pneg %p285
      $region46: #{tpu_custom_call.1} parent=5 // pred_check_branch
        %288 = sbr.rel (%p286) target = $region48
      $region47: #{tpu_custom_call.1} parent=5 // pred_region
        %s289 = ssub.s32 %s16, 2
        // Predicated region
        $region49: #{tpu_custom_call.1} parent=47 // pred_check
          %p290 = pneg %p129
        $region50: #{tpu_custom_call.1} parent=47 // pred_check_branch
          %292 = sbr.rel (%p290) target = $region52
        $region51: #{tpu_custom_call.1} parent=47 // pred_region
          %s293 = sand.u32 %s114, 1
          %s294 = scalar_lea.sflag [#allocation4], %s293
          %s295 = sand.u32 %s114, 1
          %s296 = smul.addr %s295, 4
          %s297 = scalar_lea.vmem [#allocation7], %s296
          %299 = dma.done %s294, 64
        $region52: #{tpu_custom_call.1} parent=47 // pred_fallthru
          _
      $region48: #{tpu_custom_call.1} parent=5 // pred_fallthru
        _
    $region6: #{tpu_custom_call.1} parent=1 // loop_footer
      %s20 = sadd.s32 1, %s16
    $region7: #{tpu_custom_call.1} parent=1 // loop_footer_branch
      %15 = sbr.rel target = $region3
    $region8: #{tpu_custom_call.1} parent=1 // loop_exit
      _
    %300 = vsyncpa [#allocation3], 1
    %s301 = scalar_lea.sflag [#allocation3], 1
    %302 = vsyncpa %s301, 1
    %303 = vsyncpa [#allocation6], 1
    %304 = vsyncpa [#allocation4], 1
    %s305 = scalar_lea.sflag [#allocation4], 1
    %306 = vsyncpa %s305, 1

</llo_original>
